<compile_context>
chip_gen: v7x
topology: tpu7x:2x2x1
jax: 0.10.0
libtpu: 0.0.40
codegen_flags: <defaults>
</compile_context>

<pallas_src>
import functools

import jax
import jax.numpy as jnp
from jax.experimental import pallas as pl
from jax.experimental.pallas import tpu as pltpu


def _loss_dsh_kernel(h1_ref, h2_ref, pred_ref, targ_ref, out_ref, acc_ref, *,
                     batch_size, tile_rows, m,
                     contrastive_scale, quantization_scale):
    step = pl.program_id(0)

    # ---- init accumulators on the first grid step ----
    @pl.when(step == 0)
    def _init():
        acc_ref[0] = jnp.float32(0.0)   # sum (pred - targ)^2
        acc_ref[1] = jnp.float32(0.0)   # sum targ*d + (1-targ)*hinge
        acc_ref[2] = jnp.float32(0.0)   # sum |abs(h1)-1| + |abs(h2)-1|

    h1 = h1_ref[...].astype(jnp.float32)          # (TB, N)
    h2 = h2_ref[...].astype(jnp.float32)          # (TB, N)
    pred = pred_ref[...].astype(jnp.float32)      # (TB, 1)
    targ = targ_ref[...].astype(jnp.float32)      # (TB, 1)

    # Row-validity mask for a (possibly partial) last tile.  Use `where`
    # (select), not multiply, so garbage in the OOB rows cannot poison sums.
    row = jax.lax.broadcasted_iota(jnp.int32, (tile_rows, 1), 0) + step * tile_rows
    valid = row < batch_size                      # (TB, 1) bool

    # --- prediction loss partial: sum (pred - targ)^2 ---
    dpt = pred - targ
    pred_partial = jnp.sum(jnp.where(valid, dpt * dpt, 0.0))

    # --- contrastive partial (0.5 factor folded into the epilogue) ---
    dh = h1 - h2
    d = jnp.sum(dh * dh, axis=1, keepdims=True)   # (TB, 1)
    hinge = jnp.maximum(jnp.float32(m) - d, 0.0)
    c = targ * d + (1.0 - targ) * hinge
    contrastive_partial = jnp.sum(jnp.where(valid, c, 0.0))

    # --- quantization partial, fused over h1/h2 in one sweep (0.5 folded) ---
    q = jnp.abs(jnp.abs(h1) - 1.0) + jnp.abs(jnp.abs(h2) - 1.0)
    q_row = jnp.sum(q, axis=1, keepdims=True)     # (TB, 1)
    quant_partial = jnp.sum(jnp.where(valid, q_row, 0.0))

    acc_ref[0] += pred_partial
    acc_ref[1] += contrastive_partial
    acc_ref[2] += quant_partial

    # ---- finalize on the last grid step: means, 0.5 factors, weights ----
    @pl.when(step == pl.num_programs(0) - 1)
    def _finalize():
        inv_b = jnp.float32(1.0 / batch_size)
        pred_loss = acc_ref[0] * inv_b
        contrastive = jnp.float32(0.5) * acc_ref[1] * inv_b
        quantization = jnp.float32(0.5) * acc_ref[2] * inv_b
        total = (pred_loss
                 + jnp.float32(contrastive_scale) * contrastive
                 + jnp.float32(quantization_scale) * quantization)
        out_ref[0] = total
        out_ref[1] = pred_loss
        out_ref[2] = contrastive
        out_ref[3] = quantization


def loss_dsh(h1, h2, prediction, target, *,
             contrastive_weight, quantization_weight, m=None,
             block_rows=None):
    """Pallas implementation of Loss_DSH.forward.

    h1, h2: (B, N) float arrays (hash codes before binarization), any float
            dtype (kept in native dtype in HBM; upcast to f32 in-kernel).
    prediction, target: (B,) similarity scores in [0, 1].
    Returns (total, prediction_loss, contrastive_loss, quantization_loss)
    as float32 scalars, matching the PyTorch module (including the static
    "weight <= 0 => term skipped & reported as 0" branching).
    """
    b, n = h1.shape
    if m is None:
        m = 2 * n   # matches PyTorch: dim * 2

    # Batch tile: single block for small batches, otherwise 512-row tiles
    # (multiple of 8 sublanes); tail tiles are masked inside the kernel.
    if block_rows is None:
        tb = b if b <= 512 else 512
    else:
        tb = int(block_rows)
    assert tb == b or tb % 8 == 0, "block_rows must equal B or be a multiple of 8"
    grid = (pl.cdiv(b, tb),)

    pred2 = prediction.reshape(b, 1)
    targ2 = target.reshape(b, 1)

    # Static branching on the Python weights, like the PyTorch module.
    include_c = contrastive_weight > 0
    include_q = quantization_weight > 0
    cw_eff = float(contrastive_weight) if include_c else 0.0
    qw_eff = float(quantization_weight) if include_q else 0.0

    kernel = functools.partial(
        _loss_dsh_kernel,
        batch_size=int(b), tile_rows=int(tb), m=float(m),
        contrastive_scale=cw_eff, quantization_scale=qw_eff,
    )

    # VMEM budget: 2 h-inputs x 2 pipeline buffers x tile, plus pred/targ
    # blocks, plus slack.  Keep under the 64 MiB physical VMEM of v7x.
    itemsize = max(jnp.dtype(h1.dtype).itemsize, jnp.dtype(h2.dtype).itemsize)
    vmem_needed = 2 * 2 * tb * n * itemsize + 2 * 2 * tb * 4 + (2 << 20)
    vmem_limit = int(min(max(vmem_needed, 8 << 20), 64 << 20))

    out = pl.pallas_call(
        kernel,
        out_shape=jax.ShapeDtypeStruct((4,), jnp.float32),
        grid_spec=pltpu.PrefetchScalarGridSpec(
            num_scalar_prefetch=0,
            grid=grid,
            in_specs=[
                pl.BlockSpec((tb, n), lambda i: (i, 0)),
                pl.BlockSpec((tb, n), lambda i: (i, 0)),
                pl.BlockSpec((tb, 1), lambda i: (i, 0)),
                pl.BlockSpec((tb, 1), lambda i: (i, 0)),
            ],
            out_specs=pl.BlockSpec(memory_space=pltpu.SMEM),
            scratch_shapes=[pltpu.SMEM((3,), jnp.float32)],
        ),
        compiler_params=pltpu.CompilerParams(
            dimension_semantics=("arbitrary",),   # batch axis is a reduction
            vmem_limit_bytes=vmem_limit,
        ),
    )(h1, h2, pred2, targ2)

    total = out[0]
    pred_loss = out[1]
    contrastive = out[2] if include_c else jnp.float32(0.0)
    quantization = out[3] if include_q else jnp.float32(0.0)
    return total, pred_loss, contrastive, quantization


def _reference(h1, h2, prediction, target, cw, qw, m=None):
    h1 = h1.astype(jnp.float32)
    h2 = h2.astype(jnp.float32)
    prediction = prediction.astype(jnp.float32)
    target = target.astype(jnp.float32)
    b, n = h1.shape
    if m is None:
        m = 2 * n
    pred_loss = jnp.mean((prediction - target) ** 2)
    d = jnp.sum((h1 - h2) ** 2, axis=1)
    contrastive = jnp.mean(0.5 * target * d
                           + 0.5 * (1 - target) * jnp.maximum(m - d, 0.0))
    reg1 = jnp.mean(jnp.sum(jnp.abs(jnp.abs(h1) - 1.0), axis=1))
    reg2 = jnp.mean(jnp.sum(jnp.abs(jnp.abs(h2) - 1.0), axis=1))
    quant = 0.5 * (reg1 + reg2)
    if cw <= 0:
        contrastive = jnp.float32(0.0)
    if qw <= 0:
        quant = jnp.float32(0.0)
    total = pred_loss + (cw if cw > 0 else 0.0) * contrastive \
        + (qw if qw > 0 else 0.0) * quant
    return total, pred_loss, contrastive, quant


def _check(h1, h2, prediction, target, cw, qw, **kw):
    outs = loss_dsh(h1, h2, prediction, target,
                    contrastive_weight=cw, quantization_weight=qw, **kw)
    outs = jax.block_until_ready(outs)
    refs = _reference(h1, h2, prediction, target, cw, qw)
    for o, r in zip(outs, refs):
        assert jnp.allclose(o, r, rtol=1e-5, atol=1e-5), (o, r)


if __name__ == "__main__":
    key = jax.random.PRNGKey(0)
    k1, k2, k3, k4 = jax.random.split(key, 4)

    # Case 1: small batch, single block, f32 inputs.
    B, N = 8, 32
    h1 = jax.random.normal(k1, (B, N), dtype=jnp.float32)
    h2 = jax.random.normal(k2, (B, N), dtype=jnp.float32)
    prediction = jax.random.uniform(k3, (B,), dtype=jnp.float32)
    target = (jax.random.uniform(k4, (B,)) > 0.5).astype(jnp.float32)
    _check(h1, h2, prediction, target, 1.0, 0.1)

    # Case 2: batch not a multiple of the tile -> exercises grid + tail mask.
    B2 = 20
    h1b = jax.random.normal(k1, (B2, N), dtype=jnp.float32)
    h2b = jax.random.normal(k2, (B2, N), dtype=jnp.float32)
    predb = jax.random.uniform(k3, (B2,), dtype=jnp.float32)
    targb = (jax.random.uniform(k4, (B2,)) > 0.5).astype(jnp.float32)
    _check(h1b, h2b, predb, targb, 1.0, 0.1, block_rows=8)

    # Case 3: bf16 hash codes kept in native dtype (no wrapper cast) and a
    # zero quantization weight (static skip, matches PyTorch branching).
    h1c = h1.astype(jnp.bfloat16)
    h2c = h2.astype(jnp.bfloat16)
    _check(h1c, h2c, prediction, target, 1.0, 0.0)

    print("KERNEL_OK")
</pallas_src>

<mosaic_0001>
module attributes {stable_mosaic.version = 11 : i64} {
  func.func @_loss_dsh_kernel(%arg0: i32, %arg1: memref<8x32xf32, #tpu.memory_space<vmem>>, %arg2: memref<8x32xf32, #tpu.memory_space<vmem>>, %arg3: memref<8x1xf32, #tpu.memory_space<vmem>>, %arg4: memref<8x1xf32, #tpu.memory_space<vmem>>, %arg5: memref<4xf32, #tpu.memory_space<smem>>, %arg6: memref<3xf32, #tpu.memory_space<smem>>) attributes {dimension_semantics = [#tpu.dimension_semantics<arbitrary>], iteration_bounds = array<i64: 1>, scalar_prefetch = 0 : i64, scratch_operands = 1 : i64, tpu.core_type = #tpu.core_type<tc>, window_params = [{transform_indices = @transform_0, window_bounds = array<i64: 8, 32>}, {transform_indices = @transform_1, window_bounds = array<i64: 8, 32>}, {transform_indices = @transform_2, window_bounds = array<i64: 8, 1>}, {transform_indices = @transform_3, window_bounds = array<i64: 8, 1>}, {transform_indices = @transform_4, window_bounds = array<i64: 4>}]} {
    %c0_i32 = arith.constant 0 : i32
    %0 = arith.cmpi eq, %arg0, %c0_i32 : i32
    %1 = arith.extui %0 : i1 to i32
    %c0_i32_0 = arith.constant 0 : i32
    %2 = arith.cmpi ne, %1, %c0_i32_0 : i32
    scf.if %2 {
      %cst_27 = arith.constant 0.000000e+00 : f32
      %c0_28 = arith.constant 0 : index
      %69 = memref.load %arg6[%c0_28] : memref<3xf32, #tpu.memory_space<smem>>
      memref.store %cst_27, %arg6[%c0_28] : memref<3xf32, #tpu.memory_space<smem>>
      %cst_29 = arith.constant 0.000000e+00 : f32
      %c1_30 = arith.constant 1 : index
      %70 = memref.load %arg6[%c1_30] : memref<3xf32, #tpu.memory_space<smem>>
      memref.store %cst_29, %arg6[%c1_30] : memref<3xf32, #tpu.memory_space<smem>>
      %cst_31 = arith.constant 0.000000e+00 : f32
      %c2_32 = arith.constant 2 : index
      %71 = memref.load %arg6[%c2_32] : memref<3xf32, #tpu.memory_space<smem>>
      memref.store %cst_31, %arg6[%c2_32] : memref<3xf32, #tpu.memory_space<smem>>
    } else {
    }
    %c0 = arith.constant 0 : index
    %c0_1 = arith.constant 0 : index
    %3 = vector.load %arg1[%c0, %c0_1] : memref<8x32xf32, #tpu.memory_space<vmem>>, vector<8x32xf32>
    %c0_2 = arith.constant 0 : index
    %c0_3 = arith.constant 0 : index
    %4 = vector.load %arg2[%c0_2, %c0_3] : memref<8x32xf32, #tpu.memory_space<vmem>>, vector<8x32xf32>
    %c0_4 = arith.constant 0 : index
    %c0_5 = arith.constant 0 : index
    %5 = vector.load %arg3[%c0_4, %c0_5] : memref<8x1xf32, #tpu.memory_space<vmem>>, vector<8x1xf32>
    %c0_6 = arith.constant 0 : index
    %c0_7 = arith.constant 0 : index
    %6 = vector.load %arg4[%c0_6, %c0_7] : memref<8x1xf32, #tpu.memory_space<vmem>>, vector<8x1xf32>
    %7 = tpu.iota {dimensions = array<i32: 0>} : vector<8x1xi32>
    %c8_i32 = arith.constant 8 : i32
    %8 = arith.muli %arg0, %c8_i32 : i32
    %9 = vector.broadcast %8 : i32 to vector<8x1xi32>
    %10 = arith.addi %7, %9 : vector<8x1xi32>
    %c8_i32_8 = arith.constant 8 : i32
    %11 = vector.broadcast %c8_i32_8 : i32 to vector<8x1xi32>
    %12 = arith.cmpi slt, %10, %11 : vector<8x1xi32>
    %13 = arith.subf %5, %6 : vector<8x1xf32>
    %14 = arith.mulf %13, %13 : vector<8x1xf32>
    %cst = arith.constant 0.000000e+00 : f32
    %15 = vector.broadcast %cst : f32 to vector<8x1xf32>
    %16 = arith.select %12, %14, %15 : vector<8x1xi1>, vector<8x1xf32>
    %17 = vector.shape_cast %16 : vector<8x1xf32> to vector<1x8x1xf32>
    %cst_9 = arith.constant dense<0.000000e+00> : vector<1xf32>
    %18 = vector.multi_reduction <add>, %17, %cst_9 [1, 2] : vector<1x8x1xf32> to vector<1xf32>
    %19 = vector.shape_cast %18 : vector<1xf32> to vector<1x1x1xf32>
    %20 = vector.extract %19[0, 0, 0] : f32 from vector<1x1x1xf32>
    %21 = arith.subf %3, %4 : vector<8x32xf32>
    %22 = arith.mulf %21, %21 : vector<8x32xf32>
    %cst_10 = arith.constant dense<0.000000e+00> : vector<8xf32>
    %23 = vector.multi_reduction <add>, %22, %cst_10 [1] : vector<8x32xf32> to vector<8xf32>
    %24 = vector.shape_cast %23 : vector<8xf32> to vector<8x1xf32>
    %cst_11 = arith.constant 6.400000e+01 : f32
    %25 = vector.broadcast %cst_11 : f32 to vector<8x1xf32>
    %26 = arith.subf %25, %24 : vector<8x1xf32>
    %cst_12 = arith.constant 0.000000e+00 : f32
    %27 = vector.broadcast %cst_12 : f32 to vector<8x1xf32>
    %28 = arith.maximumf %26, %27 : vector<8x1xf32>
    %29 = arith.mulf %6, %24 : vector<8x1xf32>
    %cst_13 = arith.constant 1.000000e+00 : f32
    %30 = vector.broadcast %cst_13 : f32 to vector<8x1xf32>
    %31 = arith.subf %30, %6 : vector<8x1xf32>
    %32 = arith.mulf %31, %28 : vector<8x1xf32>
    %33 = arith.addf %29, %32 : vector<8x1xf32>
    %cst_14 = arith.constant 0.000000e+00 : f32
    %34 = vector.broadcast %cst_14 : f32 to vector<8x1xf32>
    %35 = arith.select %12, %33, %34 : vector<8x1xi1>, vector<8x1xf32>
    %36 = vector.shape_cast %35 : vector<8x1xf32> to vector<1x8x1xf32>
    %cst_15 = arith.constant dense<0.000000e+00> : vector<1xf32>
    %37 = vector.multi_reduction <add>, %36, %cst_15 [1, 2] : vector<1x8x1xf32> to vector<1xf32>
    %38 = vector.shape_cast %37 : vector<1xf32> to vector<1x1x1xf32>
    %39 = vector.extract %38[0, 0, 0] : f32 from vector<1x1x1xf32>
    %40 = math.absf %3 : vector<8x32xf32>
    %cst_16 = arith.constant 1.000000e+00 : f32
    %41 = vector.broadcast %cst_16 : f32 to vector<8x32xf32>
    %42 = arith.subf %40, %41 : vector<8x32xf32>
    %43 = math.absf %42 : vector<8x32xf32>
    %44 = math.absf %4 : vector<8x32xf32>
    %cst_17 = arith.constant 1.000000e+00 : f32
    %45 = vector.broadcast %cst_17 : f32 to vector<8x32xf32>
    %46 = arith.subf %44, %45 : vector<8x32xf32>
    %47 = math.absf %46 : vector<8x32xf32>
    %48 = arith.addf %43, %47 : vector<8x32xf32>
    %cst_18 = arith.constant dense<0.000000e+00> : vector<8xf32>
    %49 = vector.multi_reduction <add>, %48, %cst_18 [1] : vector<8x32xf32> to vector<8xf32>
    %50 = vector.shape_cast %49 : vector<8xf32> to vector<8x1xf32>
    %cst_19 = arith.constant 0.000000e+00 : f32
    %51 = vector.broadcast %cst_19 : f32 to vector<8x1xf32>
    %52 = arith.select %12, %50, %51 : vector<8x1xi1>, vector<8x1xf32>
    %53 = vector.shape_cast %52 : vector<8x1xf32> to vector<1x8x1xf32>
    %cst_20 = arith.constant dense<0.000000e+00> : vector<1xf32>
    %54 = vector.multi_reduction <add>, %53, %cst_20 [1, 2] : vector<1x8x1xf32> to vector<1xf32>
    %55 = vector.shape_cast %54 : vector<1xf32> to vector<1x1x1xf32>
    %56 = vector.extract %55[0, 0, 0] : f32 from vector<1x1x1xf32>
    %c0_21 = arith.constant 0 : index
    %57 = memref.load %arg6[%c0_21] : memref<3xf32, #tpu.memory_space<smem>>
    %58 = arith.addf %57, %20 : f32
    %c0_22 = arith.constant 0 : index
    %59 = memref.load %arg6[%c0_22] : memref<3xf32, #tpu.memory_space<smem>>
    memref.store %58, %arg6[%c0_22] : memref<3xf32, #tpu.memory_space<smem>>
    %c1 = arith.constant 1 : index
    %60 = memref.load %arg6[%c1] : memref<3xf32, #tpu.memory_space<smem>>
    %61 = arith.addf %60, %39 : f32
    %c1_23 = arith.constant 1 : index
    %62 = memref.load %arg6[%c1_23] : memref<3xf32, #tpu.memory_space<smem>>
    memref.store %61, %arg6[%c1_23] : memref<3xf32, #tpu.memory_space<smem>>
    %c2 = arith.constant 2 : index
    %63 = memref.load %arg6[%c2] : memref<3xf32, #tpu.memory_space<smem>>
    %64 = arith.addf %63, %56 : f32
    %c2_24 = arith.constant 2 : index
    %65 = memref.load %arg6[%c2_24] : memref<3xf32, #tpu.memory_space<smem>>
    memref.store %64, %arg6[%c2_24] : memref<3xf32, #tpu.memory_space<smem>>
    %c0_i32_25 = arith.constant 0 : i32
    %66 = arith.cmpi eq, %arg0, %c0_i32_25 : i32
    %67 = arith.extui %66 : i1 to i32
    %c0_i32_26 = arith.constant 0 : i32
    %68 = arith.cmpi ne, %67, %c0_i32_26 : i32
    scf.if %68 {
      %c0_27 = arith.constant 0 : index
      %69 = memref.load %arg6[%c0_27] : memref<3xf32, #tpu.memory_space<smem>>
      %cst_28 = arith.constant 1.250000e-01 : f32
      %70 = arith.mulf %69, %cst_28 : f32
      %c1_29 = arith.constant 1 : index
      %71 = memref.load %arg6[%c1_29] : memref<3xf32, #tpu.memory_space<smem>>
      %cst_30 = arith.constant 5.000000e-01 : f32
      %72 = arith.mulf %cst_30, %71 : f32
      %cst_31 = arith.constant 1.250000e-01 : f32
      %73 = arith.mulf %72, %cst_31 : f32
      %c2_32 = arith.constant 2 : index
      %74 = memref.load %arg6[%c2_32] : memref<3xf32, #tpu.memory_space<smem>>
      %cst_33 = arith.constant 5.000000e-01 : f32
      %75 = arith.mulf %cst_33, %74 : f32
      %cst_34 = arith.constant 1.250000e-01 : f32
      %76 = arith.mulf %75, %cst_34 : f32
      %cst_35 = arith.constant 1.000000e+00 : f32
      %77 = arith.mulf %cst_35, %73 : f32
      %78 = arith.addf %70, %77 : f32
      %cst_36 = arith.constant 1.000000e-01 : f32
      %79 = arith.mulf %cst_36, %76 : f32
      %80 = arith.addf %78, %79 : f32
      %c0_37 = arith.constant 0 : index
      %81 = memref.load %arg5[%c0_37] : memref<4xf32, #tpu.memory_space<smem>>
      memref.store %80, %arg5[%c0_37] : memref<4xf32, #tpu.memory_space<smem>>
      %c1_38 = arith.constant 1 : index
      %82 = memref.load %arg5[%c1_38] : memref<4xf32, #tpu.memory_space<smem>>
      memref.store %70, %arg5[%c1_38] : memref<4xf32, #tpu.memory_space<smem>>
      %c2_39 = arith.constant 2 : index
      %83 = memref.load %arg5[%c2_39] : memref<4xf32, #tpu.memory_space<smem>>
      memref.store %73, %arg5[%c2_39] : memref<4xf32, #tpu.memory_space<smem>>
      %c3 = arith.constant 3 : index
      %84 = memref.load %arg5[%c3] : memref<4xf32, #tpu.memory_space<smem>>
      memref.store %76, %arg5[%c3] : memref<4xf32, #tpu.memory_space<smem>>
    } else {
    }
    return
  }
  func.func @transform_0(%arg0: i32) -> (i32, i32) {
    %c0_i32 = arith.constant 0 : i32
    %c0_i32_0 = arith.constant 0 : i32
    return %arg0, %c0_i32 : i32, i32
  }
  func.func @transform_1(%arg0: i32) -> (i32, i32) {
    %c0_i32 = arith.constant 0 : i32
    %c0_i32_0 = arith.constant 0 : i32
    return %arg0, %c0_i32 : i32, i32
  }
  func.func @transform_2(%arg0: i32) -> (i32, i32) {
    %c0_i32 = arith.constant 0 : i32
    %c0_i32_0 = arith.constant 0 : i32
    return %arg0, %c0_i32 : i32, i32
  }
  func.func @transform_3(%arg0: i32) -> (i32, i32) {
    %c0_i32 = arith.constant 0 : i32
    %c0_i32_0 = arith.constant 0 : i32
    return %arg0, %c0_i32 : i32, i32
  }
  func.func @transform_4(%arg0: i32) -> i32 {
    %c0_i32 = arith.constant 0 : i32
    %c0_i32_0 = arith.constant 0 : i32
    return %c0_i32 : i32
  }
}

</mosaic_0001>

<llo_original>
// kernel: tpu_custom_call.1
$region0: #{tpu_custom_call.1}
  #allocation0 [shape = 'u32[]', space=smem, size = 0x4, offset = 0x4, fixed_abs, tag = 'smem constant byte address 0x4 - core index']
  #allocation1 [shape = 'u32[144,128]{1,0:T(1,128)}', space=vmem, size = 0x12000, scoped, tag = 'internal scratch']
  #allocation2 [shape = 'f32[3]{0:T(128)}', space=smem, size = 0x200, scoped, tag = 'scratch operand']
  %s0 = inlined_call_operand.vmem [shape: f32[8,32], index: 0, kind: input, shape index: {}]
  %s1 = inlined_call_operand.vmem [shape: f32[8,32], index: 1, kind: input, shape index: {}]
  %s2 = inlined_call_operand.vmem [shape: f32[8,1], index: 2, kind: input, shape index: {}]
  %s3 = inlined_call_operand.vmem [shape: f32[8,1], index: 3, kind: input, shape index: {}]
  %s4 = inlined_call_operand.hbm [shape: f32[4], index: 4, kind: output, shape index: {}]
  %s5 = sld [smem:[#allocation0]]
  $region34: #{tpu_custom_call.1} parent=0
    _
  %s7 = ssub.s32 1, %s5
  %s8 = scalar_select 0, %s7, %s5
  $region1: #{tpu_custom_call.1} parent=0
    #allocation3 [shape = 'u8[512]{0}', space=smem, size = 0x200, scoped, tag = 'output window, operand 0, single buffered']
    #allocation4 [shape = 's32[1]{0}', space=sflag, size = 0x4, scoped, tag = 'scoped memory for tpu_custom_call.1']
    %9 = vsyncpa [#allocation4], 0
    // Predicated region
    $region2: #{tpu_custom_call.1} parent=1 // pred_check
      _
    $region3: #{tpu_custom_call.1} parent=1 // pred_check_branch
      %11 = sbr.rel (0) target = $region5
    $region4: #{tpu_custom_call.1} parent=1 // pred_region
      _
    $region5: #{tpu_custom_call.1} parent=1 // pred_fallthru
      _
    // Predicated region
    $region6: #{tpu_custom_call.1} parent=1 // pred_check
      _
    $region7: #{tpu_custom_call.1} parent=1 // pred_check_branch
      %13 = sbr.rel (0) target = $region9
    $region8: #{tpu_custom_call.1} parent=1 // pred_region
      _
    $region9: #{tpu_custom_call.1} parent=1 // pred_fallthru
      _
    // Predicated region
    $region10: #{tpu_custom_call.1} parent=1 // pred_check
      _
    $region11: #{tpu_custom_call.1} parent=1 // pred_check_branch
      %15 = sbr.rel (0) target = $region13
    $region12: #{tpu_custom_call.1} parent=1 // pred_region
      _
    $region13: #{tpu_custom_call.1} parent=1 // pred_fallthru
      _
    // Predicated region
    $region14: #{tpu_custom_call.1} parent=1 // pred_check
      _
    $region15: #{tpu_custom_call.1} parent=1 // pred_check_branch
      %17 = sbr.rel (0) target = $region17
    $region16: #{tpu_custom_call.1} parent=1 // pred_region
      _
    $region17: #{tpu_custom_call.1} parent=1 // pred_fallthru
      _
    %p18 = scmp.eq.s32.totalorder 0, 0
    // Predicated region
    $region18: #{tpu_custom_call.1} parent=1 // pred_check
      %p19 = pneg %p18
    $region19: #{tpu_custom_call.1} parent=1 // pred_check_branch
      %21 = sbr.rel (%p19) target = $region21
    $region20: #{tpu_custom_call.1} parent=1 // pred_region
      %s22 = scalar_lea.smem [#allocation2], 0
      %23 = sst [smem:[%s22]] 0.0
      %s24 = scalar_lea.smem [#allocation2], 1
      %25 = sst [smem:[%s24]] 0.0
      %s26 = scalar_lea.smem [#allocation2], 2
      %27 = sst [smem:[%s26]] 0.0
    $region21: #{tpu_custom_call.1} parent=1 // pred_fallthru
      _
    %v28 = vld [vmem:[%s0] sm:$0xff]
    %v29 = vld [vmem:[%s1] sm:$0xff]
    %v30 = vld [vmem:[%s2] sm:$0xff]
    %v31 = vld [vmem:[%s3] sm:$0xff]
    %v32 = vlaneseq
    %v33 = vshrl.u32 %v32, 7
    %s34 = smul.u32 0, 8
    %v35 = vstv %s34
    %v36 = vadd.s32 %v33, %v35
    %vm37 = vcmp.lt.s32.totalorder %v36, 8
    %v38 = vsub.f32 %v30, %v31
    %v39 = vmul.f32 %v38, %v38
    %v40 = vsel %vm37, %v39, 0.0
    %vm41 = vcmask 7168
    %v42 = vsel %vm41, %v40, 0.0
    %43 = vadd.xlane.f32.xlu0 %v42
    %v44 = vpop.xlane.xlu0 %43
    %v45 = vrot.slane %v44, 4
    %v46 = vadd.f32 %v44, %v45
    %v47 = vrot.slane %v46, 2
    %v48 = vadd.f32 %v46, %v47
    %v49 = vrot.slane %v48, 1
    %v50 = vadd.f32 %v48, %v49
    %s51 = vtos %v50
    %v52 = vsub.f32 %v28, %v29
    %v53 = vmul.f32 %v52, %v52
    %vm54 = vcmask 261120
    %v55 = vsel %vm54, %v53, 0.0
    %56 = vadd.xlane.f32.xlu0 %v55
    %v57 = vpop.xlane.xlu0 %56
    %v58 = vsub.f32 64.0, %v57
    %v59 = vmax.f32 %v58, 0.0
    %v60 = vmul.f32 %v31, %v57
    %v61 = vsub.f32 1.0, %v31
    %v62 = vmul.f32 %v61, %v59
    %v63 = vadd.f32 %v60, %v62
    %v64 = vsel %vm37, %v63, 0.0
    %v65 = vsel %vm41, %v64, 0.0
    %66 = vadd.xlane.f32.xlu0 %v65
    %v67 = vpop.xlane.xlu0 %66
    %v68 = vrot.slane %v67, 4
    %v69 = vadd.f32 %v67, %v68
    %v70 = vrot.slane %v69, 2
    %v71 = vadd.f32 %v69, %v70
    %v72 = vrot.slane %v71, 1
    %v73 = vadd.f32 %v71, %v72
    %s74 = vtos %v73
    %v75 = vand.u32 2147483647, %v28
    %v76 = vsub.f32 %v75, 1.0
    %v77 = vand.u32 2147483647, %v76
    %v78 = vand.u32 2147483647, %v29
    %v79 = vsub.f32 %v78, 1.0
    %v80 = vand.u32 2147483647, %v79
    %v81 = vadd.f32 %v77, %v80
    %v82 = vsel %vm54, %v81, 0.0
    %83 = vadd.xlane.f32.xlu0 %v82
    %v84 = vpop.xlane.xlu0 %83
    %v85 = vsel %vm37, %v84, 0.0
    %v86 = vsel %vm41, %v85, 0.0
    %87 = vadd.xlane.f32.xlu0 %v86
    %v88 = vpop.xlane.xlu0 %87
    %v89 = vrot.slane %v88, 4
    %v90 = vadd.f32 %v88, %v89
    %v91 = vrot.slane %v90, 2
    %v92 = vadd.f32 %v90, %v91
    %v93 = vrot.slane %v92, 1
    %v94 = vadd.f32 %v92, %v93
    %s95 = vtos %v94
    %s96 = sld [smem:[#allocation2]]
    %s97 = sadd.f32 %s96, %s51
    %s98 = scalar_lea.smem [#allocation2], 0
    %99 = sst [smem:[%s98]] %s97
    %s100 = sld [smem:[#allocation2 + $0x1]]
    %s101 = sadd.f32 %s100, %s74
    %s102 = scalar_lea.smem [#allocation2], 1
    %103 = sst [smem:[%s102]] %s101
    %s104 = sld [smem:[#allocation2 + $0x2]]
    %s105 = sadd.f32 %s104, %s95
    %s106 = scalar_lea.smem [#allocation2], 2
    %107 = sst [smem:[%s106]] %s105
    // Predicated region
    $region22: #{tpu_custom_call.1} parent=1 // pred_check
      %p108 = pneg %p18
    $region23: #{tpu_custom_call.1} parent=1 // pred_check_branch
      %110 = sbr.rel (%p108) target = $region25
    $region24: #{tpu_custom_call.1} parent=1 // pred_region
      %s111 = sld [smem:[#allocation2]]
      %s112 = smul.f32 %s111, 0.125
      %s113 = sld [smem:[#allocation2 + $0x1]]
      %s114 = smul.f32 %s113, 0.5
      %s115 = smul.f32 %s114, 0.125
      %s116 = sld [smem:[#allocation2 + $0x2]]
      %s117 = smul.f32 %s116, 0.5
      %s118 = smul.f32 %s117, 0.125
      %s119 = sadd.f32 %s112, %s115
      %s120 = smul.f32 %s118, 0.1
      %s121 = sadd.f32 %s119, %s120
      %s122 = scalar_lea.smem [#allocation3], 0
      %123 = sst [smem:[%s122]] %s121
      %s124 = scalar_lea.smem [#allocation3], 1
      %125 = sst [smem:[%s124]] %s112
      %s126 = scalar_lea.smem [#allocation3], 2
      %127 = sst [smem:[%s126]] %s115
      %s128 = scalar_lea.smem [#allocation3], 3
      %129 = sst [smem:[%s128]] %s118
    $region25: #{tpu_custom_call.1} parent=1 // pred_fallthru
      _
    // Predicated region
    $region26: #{tpu_custom_call.1} parent=1 // pred_check
      _
    $region27: #{tpu_custom_call.1} parent=1 // pred_check_branch
      %131 = sbr.rel (0) target = $region29
    $region28: #{tpu_custom_call.1} parent=1 // pred_region
      %s133 = ssub.s32 16, 16
      %134 = vsyncadd [#allocation4], %s133
      %137 = dma.smem_to_hbm [#allocation3], 16, %s4, [#allocation4]
    $region29: #{tpu_custom_call.1} parent=1 // pred_fallthru
      _
    // Predicated region
    $region30: #{tpu_custom_call.1} parent=1 // pred_check
      _
    $region31: #{tpu_custom_call.1} parent=1 // pred_check_branch
      %139 = sbr.rel (0) target = $region33
    $region32: #{tpu_custom_call.1} parent=1 // pred_region
      %140 = dma.done [#allocation4], 16
    $region33: #{tpu_custom_call.1} parent=1 // pred_fallthru
      _
    %141 = sfence
    %142 = vsyncpa [#allocation4], 1

</llo_original>
